<compile_context>
chip_gen: v7x
topology: tpu7x:2x2x1
jax: 0.10.0
libtpu: 0.0.40
codegen_flags: <defaults>
</compile_context>

<pallas_src>
import jax
import jax.numpy as jnp
from jax import lax
from jax.experimental import pallas as pl
from jax.experimental.pallas import tpu as pltpu


_VMEM_LIMIT = 48 * 1024 * 1024  # headroom under v7x's 64 MiB physical VMEM


def _round_up(x, m):
    return (x + m - 1) // m * m


def _pick_tile(n, preferred=512):
    # Lane-dense tile (multiple of 128), capped at `preferred`.
    return min(preferred, _round_up(n, 128))


# --------------------------------------------------------------------------
# Kernel 1a: tiled feature projection  support = x @ W
# --------------------------------------------------------------------------
def _support_kernel(x_ref, w_ref, s_ref):
    s_ref[...] = jnp.dot(x_ref[...], w_ref[...],
                         preferred_element_type=jnp.float32)


def _support_pallas(x, w, *, tile):
    Np, F = x.shape
    H = w.shape[1]
    return pl.pallas_call(
        _support_kernel,
        out_shape=jax.ShapeDtypeStruct((Np, H), jnp.float32),
        grid_spec=pltpu.PrefetchScalarGridSpec(
            num_scalar_prefetch=0,
            grid=(Np // tile,),
            in_specs=[
                pl.BlockSpec((tile, F), lambda i: (i, 0)),
                pl.BlockSpec((F, H), lambda i: (0, 0)),   # W resident
            ],
            out_specs=pl.BlockSpec((tile, H), lambda i: (i, 0)),
        ),
        compiler_params=pltpu.CompilerParams(
            dimension_semantics=("parallel",),
            vmem_limit_bytes=_VMEM_LIMIT,
        ),
    )(x, w)


# --------------------------------------------------------------------------
# Kernel 1b: tiled aggregation  z = relu(adj @ support)
# --------------------------------------------------------------------------
def _agg_kernel(adj_ref, s_ref, z_ref, acc_ref):
    k = pl.program_id(1)

    @pl.when(k == 0)
    def _():
        acc_ref[...] = jnp.zeros_like(acc_ref)

    acc_ref[...] += jnp.dot(adj_ref[...], s_ref[...],
                            preferred_element_type=jnp.float32)

    @pl.when(k == pl.num_programs(1) - 1)
    def _():
        z_ref[...] = jnp.maximum(acc_ref[...], 0.0)


def _agg_pallas(adj, support, *, tile):
    Np = adj.shape[0]
    H = support.shape[1]
    grid = (Np // tile, Np // tile)
    return pl.pallas_call(
        _agg_kernel,
        out_shape=jax.ShapeDtypeStruct((Np, H), jnp.float32),
        grid_spec=pltpu.PrefetchScalarGridSpec(
            num_scalar_prefetch=0,
            grid=grid,
            in_specs=[
                pl.BlockSpec((tile, tile), lambda i, k: (i, k)),  # adj tile
                pl.BlockSpec((tile, H), lambda i, k: (k, 0)),     # support rows
            ],
            out_specs=pl.BlockSpec((tile, H), lambda i, k: (i, 0)),
            scratch_shapes=[pltpu.VMEM((tile, H), jnp.float32)],
        ),
        compiler_params=pltpu.CompilerParams(
            dimension_semantics=("parallel", "arbitrary"),
            vmem_limit_bytes=_VMEM_LIMIT,
        ),
    )(adj, support)


# --------------------------------------------------------------------------
# Kernel 1c: tiled row-sum of adj (default x = ones path)
# --------------------------------------------------------------------------
def _rowsum_kernel(adj_ref, deg_ref, acc_ref):
    k = pl.program_id(1)

    @pl.when(k == 0)
    def _():
        acc_ref[...] = jnp.zeros_like(acc_ref)

    acc_ref[...] += jnp.sum(adj_ref[...], axis=1, keepdims=True)

    @pl.when(k == pl.num_programs(1) - 1)
    def _():
        deg_ref[...] = acc_ref[...]


def _rowsum_pallas(adj, *, tile):
    Np = adj.shape[0]
    grid = (Np // tile, Np // tile)
    return pl.pallas_call(
        _rowsum_kernel,
        out_shape=jax.ShapeDtypeStruct((Np, 1), jnp.float32),
        grid_spec=pltpu.PrefetchScalarGridSpec(
            num_scalar_prefetch=0,
            grid=grid,
            in_specs=[pl.BlockSpec((tile, tile), lambda i, k: (i, k))],
            out_specs=pl.BlockSpec((tile, 1), lambda i, k: (i, 0)),
            scratch_shapes=[pltpu.VMEM((tile, 1), jnp.float32)],
        ),
        compiler_params=pltpu.CompilerParams(
            dimension_semantics=("parallel", "arbitrary"),
            vmem_limit_bytes=_VMEM_LIMIT,
        ),
    )(adj)


# --------------------------------------------------------------------------
# Kernel 2: tiled inner-product decoder  A = sigmoid(z @ z.T)
# --------------------------------------------------------------------------
def _decoder_kernel(zr_ref, zc_ref, out_ref):
    # Contract the feature dim of both operands directly (no z.T materialization).
    logits = lax.dot_general(
        zr_ref[...], zc_ref[...],
        dimension_numbers=(((1,), (1,)), ((), ())),
        preferred_element_type=jnp.float32,
    )
    out_ref[...] = jax.nn.sigmoid(logits)


def _decoder_pallas(z, *, tile):
    Np, H = z.shape
    grid = (Np // tile, Np // tile)
    return pl.pallas_call(
        _decoder_kernel,
        out_shape=jax.ShapeDtypeStruct((Np, Np), jnp.float32),
        grid_spec=pltpu.PrefetchScalarGridSpec(
            num_scalar_prefetch=0,
            grid=grid,
            # z passed twice: row-tile slab and col-tile slab, auto double-buffered.
            in_specs=[
                pl.BlockSpec((tile, H), lambda i, j: (i, 0)),
                pl.BlockSpec((tile, H), lambda i, j: (j, 0)),
            ],
            out_specs=pl.BlockSpec((tile, tile), lambda i, j: (i, j)),
        ),
        compiler_params=pltpu.CompilerParams(
            dimension_semantics=("parallel", "parallel"),
            vmem_limit_bytes=_VMEM_LIMIT,
        ),
    )(z, z)


# --------------------------------------------------------------------------
# Forward wrapper reproducing GraFRankModelAEVariant.forward
# --------------------------------------------------------------------------
def grafrank_ae_forward(
    atac_feature,
    scrna_feature,
    adj_norm,
    edge_attr,
    gc1_weight,
    *,
    use_atac_feature=False,
    use_scrna_feature=False,
    use_edge_attr=False,
    tile=512,
):
    # Identity fusion ignores edge_index / edge_attr; zeroing it is dead work.
    del edge_attr

    if use_atac_feature and use_scrna_feature:
        # TODO(synk): GraFrank fusion branch not supported (missing sources).
        raise NotImplementedError("GraFrank fusion branch not supported")
    assert not use_edge_attr

    N = adj_norm.shape[0]
    F_in, _H = gc1_weight.shape
    adj_norm = adj_norm.astype(jnp.float32)
    gc1_weight = gc1_weight.astype(jnp.float32)

    t = _pick_tile(N, preferred=tile)
    Np = _round_up(N, t)
    pad_n = Np - N
    adj_p = jnp.pad(adj_norm, ((0, pad_n), (0, pad_n))) if pad_n else adj_norm

    if use_atac_feature or use_scrna_feature:
        x = atac_feature if use_atac_feature else scrna_feature
        x = x.astype(jnp.float32)
        assert x.shape == (N, F_in), "node feature dim must match gc1 fan-in"
        x_p = jnp.pad(x, ((0, pad_n), (0, 0))) if pad_n else x
        support = _support_pallas(x_p, gc1_weight, tile=t)   # [Np, H]
        z = _agg_pallas(adj_p, support, tile=t)              # [Np, H]
    else:
        # Default config: x = ones  =>  x @ W has identical rows equal to colsum(W),
        # so z = relu(rowsum(adj)[:, None] * colsum(W)[None, :]) — a rank-1 outer
        # product. Skips both GCN matmuls; only a streaming row-sum of adj remains.
        assert scrna_feature.shape[1] == F_in, (
            "default path requires scrna_feat_dim == fusion_dim (gc1 fan-in)")
        deg = _rowsum_pallas(adj_p, tile=t)            # [Np, 1]
        w_colsum = jnp.sum(gc1_weight, axis=0)         # [H]
        z = jnp.maximum(deg * w_colsum[None, :], 0.0)  # [Np, H]

    a_pred = _decoder_pallas(z, tile=t)
    return a_pred[:N, :N]


def _reference(x, adj, w):
    z = jax.nn.relu(adj @ (x @ w))
    return jax.nn.sigmoid(z @ z.T)


if __name__ == "__main__":
    # Small shapes consistent with the module (scrna_feat_dim == fusion_dim required
    # by gc1 in the Identity / default path).
    N = 64
    scrna_feat_dim = fusion_dim = 32
    atac_feat_dim = 24
    hidden_dim = 16
    edge_channels = 8
    E = 128

    key = jax.random.PRNGKey(0)
    k_atac, k_scrna, k_adj, k_edge, k_w = jax.random.split(key, 5)

    atac_feature = jax.random.normal(k_atac, (N, atac_feat_dim), dtype=jnp.float32)
    scrna_feature = jax.random.normal(k_scrna, (N, scrna_feat_dim), dtype=jnp.float32)
    edge_attr = jax.random.normal(k_edge, (E, edge_channels), dtype=jnp.float32)

    # Deterministic symmetric normalized adjacency with self-loops (GAE-style).
    a = (jax.random.uniform(k_adj, (N, N)) < 0.1).astype(jnp.float32)
    a = jnp.maximum(a, a.T)
    a = a + jnp.eye(N, dtype=jnp.float32)
    deg = jnp.sum(a, axis=1)
    d_inv_sqrt = 1.0 / jnp.sqrt(deg)
    adj_norm = a * d_inv_sqrt[:, None] * d_inv_sqrt[None, :]

    # GraphConvolution weight [fusion_dim, hidden_dim], glorot-uniform, deterministic.
    limit = (6.0 / (fusion_dim + hidden_dim)) ** 0.5
    gc1_weight = jax.random.uniform(
        k_w, (fusion_dim, hidden_dim), minval=-limit, maxval=limit, dtype=jnp.float32
    )

    # 1) Default module config (use_atac=False, use_scrna=False, use_edge_attr=False)
    out_default = grafrank_ae_forward(
        atac_feature, scrna_feature, adj_norm, edge_attr, gc1_weight
    )
    out_default = jax.block_until_ready(out_default)
    ref_default = _reference(jnp.ones_like(scrna_feature), adj_norm, gc1_weight)
    assert out_default.shape == (N, N)
    assert jnp.allclose(out_default, ref_default, atol=1e-5, rtol=1e-5), \
        "default-path mismatch vs JAX reference"

    # 2) use_scrna_feature=True path (exercises the tiled GCN kernels)
    out_scrna = grafrank_ae_forward(
        atac_feature, scrna_feature, adj_norm, edge_attr, gc1_weight,
        use_scrna_feature=True,
    )
    out_scrna = jax.block_until_ready(out_scrna)
    ref_scrna = _reference(scrna_feature, adj_norm, gc1_weight)
    assert out_scrna.shape == (N, N)
    assert jnp.allclose(out_scrna, ref_scrna, atol=1e-5, rtol=1e-5), \
        "scrna-path mismatch vs JAX reference"

    print("KERNEL_OK")
</pallas_src>

<mosaic_0001>
module attributes {stable_mosaic.version = 11 : i64} {
  func.func @_rowsum_kernel(%arg0: i32, %arg1: i32, %arg2: memref<128x128xf32, #tpu.memory_space<vmem>>, %arg3: memref<128x1xf32, #tpu.memory_space<vmem>>, %arg4: memref<128x1xf32, #tpu.memory_space<vmem>>) attributes {dimension_semantics = [#tpu.dimension_semantics<parallel>, #tpu.dimension_semantics<arbitrary>], iteration_bounds = array<i64: 1, 1>, scalar_prefetch = 0 : i64, scratch_operands = 1 : i64, tpu.core_type = #tpu.core_type<tc>, window_params = [{transform_indices = @transform_0, window_bounds = array<i64: 128, 128>}, {transform_indices = @transform_1, window_bounds = array<i64: 128, 1>}]} {
    %c0_i32 = arith.constant 0 : i32
    %0 = arith.cmpi eq, %arg1, %c0_i32 : i32
    %1 = arith.extui %0 : i1 to i32
    %c0_i32_0 = arith.constant 0 : i32
    %2 = arith.cmpi ne, %1, %c0_i32_0 : i32
    scf.if %2 {
      %cst_8 = arith.constant 0.000000e+00 : f32
      %12 = vector.broadcast %cst_8 : f32 to vector<128x1xf32>
      %c0_9 = arith.constant 0 : index
      %c0_10 = arith.constant 0 : index
      %13 = vector.load %arg4[%c0_9, %c0_10] : memref<128x1xf32, #tpu.memory_space<vmem>>, vector<128x1xf32>
      tpu.vector_store %arg4[%c0_9, %c0_10], %12 {strides = array<i32>} : memref<128x1xf32, #tpu.memory_space<vmem>>, vector<128x1xf32>,
    } else {
    }
    %c0 = arith.constant 0 : index
    %c0_1 = arith.constant 0 : index
    %3 = vector.load %arg4[%c0, %c0_1] : memref<128x1xf32, #tpu.memory_space<vmem>>, vector<128x1xf32>
    %c0_2 = arith.constant 0 : index
    %c0_3 = arith.constant 0 : index
    %4 = vector.load %arg2[%c0_2, %c0_3] : memref<128x128xf32, #tpu.memory_space<vmem>>, vector<128x128xf32>
    %cst = arith.constant dense<0.000000e+00> : vector<128xf32>
    %5 = vector.multi_reduction <add>, %4, %cst [1] : vector<128x128xf32> to vector<128xf32>
    %6 = vector.shape_cast %5 : vector<128xf32> to vector<128x1xf32>
    %7 = arith.addf %3, %6 : vector<128x1xf32>
    %c0_4 = arith.constant 0 : index
    %c0_5 = arith.constant 0 : index
    %8 = vector.load %arg4[%c0_4, %c0_5] : memref<128x1xf32, #tpu.memory_space<vmem>>, vector<128x1xf32>
    tpu.vector_store %arg4[%c0_4, %c0_5], %7 {strides = array<i32>} : memref<128x1xf32, #tpu.memory_space<vmem>>, vector<128x1xf32>,
    %c0_i32_6 = arith.constant 0 : i32
    %9 = arith.cmpi eq, %arg1, %c0_i32_6 : i32
    %10 = arith.extui %9 : i1 to i32
    %c0_i32_7 = arith.constant 0 : i32
    %11 = arith.cmpi ne, %10, %c0_i32_7 : i32
    scf.if %11 {
      %c0_8 = arith.constant 0 : index
      %c0_9 = arith.constant 0 : index
      %12 = vector.load %arg4[%c0_8, %c0_9] : memref<128x1xf32, #tpu.memory_space<vmem>>, vector<128x1xf32>
      %c0_10 = arith.constant 0 : index
      %c0_11 = arith.constant 0 : index
      %13 = vector.load %arg3[%c0_10, %c0_11] : memref<128x1xf32, #tpu.memory_space<vmem>>, vector<128x1xf32>
      tpu.vector_store %arg3[%c0_10, %c0_11], %12 {strides = array<i32>} : memref<128x1xf32, #tpu.memory_space<vmem>>, vector<128x1xf32>,
    } else {
    }
    return
  }
  func.func @transform_0(%arg0: i32, %arg1: i32) -> (i32, i32) {
    %c0_i32 = arith.constant 0 : i32
    return %arg0, %arg1 : i32, i32
  }
  func.func @transform_1(%arg0: i32, %arg1: i32) -> (i32, i32) {
    %c0_i32 = arith.constant 0 : i32
    %c0_i32_0 = arith.constant 0 : i32
    return %arg0, %c0_i32 : i32, i32
  }
}

</mosaic_0001>

<llo_original>
// kernel: tpu_custom_call.1
$region0: #{tpu_custom_call.1}
  #allocation0 [shape = 'u32[]', space=smem, size = 0x4, offset = 0x4, fixed_abs, tag = 'smem constant byte address 0x4 - core index']
  #allocation1 [shape = 'u32[144,128]{1,0:T(1,128)}', space=vmem, size = 0x12000, scoped, tag = 'internal scratch']
  #allocation2 [shape = 'f32[128,1]{1,0:T(8,128)}', space=vmem, size = 0x10000, scoped, tag = 'scratch operand']
  %s0 = inlined_call_operand.hbm [shape: f32[128,128], index: 0, kind: input, shape index: {}]
  %s1 = inlined_call_operand.vmem [shape: f32[128,1], index: 1, kind: output, shape index: {}]
  %s2 = sld [smem:[#allocation0]]
  $region26: #{tpu_custom_call.1} parent=0
    _
  %s4 = ssub.s32 1, %s2
  %s5 = scalar_select 0, %s4, %s2
  $region1: #{tpu_custom_call.1} parent=0
    #allocation3 [shape = 'u8[65536]{0}', space=vmem, size = 0x10000, scoped, tag = 'input window, operand 0, single buffered']
    #allocation4 [shape = 's32[1]{0}', space=sflag, size = 0x4, scoped, tag = 'scoped memory for tpu_custom_call.1']
    %6 = vsyncpa [#allocation4], 0
    // Predicated region
    $region2: #{tpu_custom_call.1} parent=1 // pred_check
      _
    $region3: #{tpu_custom_call.1} parent=1 // pred_check_branch
      %8 = sbr.rel (0) target = $region5
    $region4: #{tpu_custom_call.1} parent=1 // pred_region
      %s10 = ssub.s32 2048, 2048
      %11 = vsyncadd [#allocation4], %s10
      %s12 = sshll.u32 [#allocation3], 4
      %s13 = int_to_ptr.vmem [resolvable:$true] %s12
      %18 = dma.hbm_to_vmem [thread:$0]  %s0, 2048, %s13, [#allocation4], 128, 128, 8
    $region5: #{tpu_custom_call.1} parent=1 // pred_fallthru
      _
    // Predicated region
    $region6: #{tpu_custom_call.1} parent=1 // pred_check
      _
    $region7: #{tpu_custom_call.1} parent=1 // pred_check_branch
      %20 = sbr.rel (0) target = $region9
    $region8: #{tpu_custom_call.1} parent=1 // pred_region
      %21 = dma.done [#allocation4], 2048
    $region9: #{tpu_custom_call.1} parent=1 // pred_fallthru
      _
    %p22 = scmp.eq.s32.totalorder 0, 0
    // Predicated region
    $region10: #{tpu_custom_call.1} parent=1 // pred_check
      %p23 = pneg %p22
    $region11: #{tpu_custom_call.1} parent=1 // pred_check_branch
      %25 = sbr.rel (%p23) target = $region13
    $region12: #{tpu_custom_call.1} parent=1 // pred_region
      %vm26 = vcmask 7168
      %27 = vst.msk [vmem:[#allocation2] sm:$0xff] %vm26, 0.0
      %28 = vst.msk [vmem:[#allocation2 + $0x8] sm:$0xff] %vm26, 0.0
      %29 = vst.msk [vmem:[#allocation2 + $0x10] sm:$0xff] %vm26, 0.0
      %30 = vst.msk [vmem:[#allocation2 + $0x18] sm:$0xff] %vm26, 0.0
      %31 = vst.msk [vmem:[#allocation2 + $0x20] sm:$0xff] %vm26, 0.0
      %32 = vst.msk [vmem:[#allocation2 + $0x28] sm:$0xff] %vm26, 0.0
      %33 = vst.msk [vmem:[#allocation2 + $0x30] sm:$0xff] %vm26, 0.0
      %34 = vst.msk [vmem:[#allocation2 + $0x38] sm:$0xff] %vm26, 0.0
      %35 = vst.msk [vmem:[#allocation2 + $0x40] sm:$0xff] %vm26, 0.0
      %36 = vst.msk [vmem:[#allocation2 + $0x48] sm:$0xff] %vm26, 0.0
      %37 = vst.msk [vmem:[#allocation2 + $0x50] sm:$0xff] %vm26, 0.0
      %38 = vst.msk [vmem:[#allocation2 + $0x58] sm:$0xff] %vm26, 0.0
      %39 = vst.msk [vmem:[#allocation2 + $0x60] sm:$0xff] %vm26, 0.0
      %40 = vst.msk [vmem:[#allocation2 + $0x68] sm:$0xff] %vm26, 0.0
      %41 = vst.msk [vmem:[#allocation2 + $0x70] sm:$0xff] %vm26, 0.0
      %42 = vst.msk [vmem:[#allocation2 + $0x78] sm:$0xff] %vm26, 0.0
    $region13: #{tpu_custom_call.1} parent=1 // pred_fallthru
      _
    %v43 = vld [vmem:[#allocation2] sm:$0xff]
    %v44 = vld [vmem:[#allocation2 + $0x8] sm:$0xff]
    %v45 = vld [vmem:[#allocation2 + $0x10] sm:$0xff]
    %v46 = vld [vmem:[#allocation2 + $0x18] sm:$0xff]
    %v47 = vld [vmem:[#allocation2 + $0x20] sm:$0xff]
    %v48 = vld [vmem:[#allocation2 + $0x28] sm:$0xff]
    %v49 = vld [vmem:[#allocation2 + $0x30] sm:$0xff]
    %v50 = vld [vmem:[#allocation2 + $0x38] sm:$0xff]
    %v51 = vld [vmem:[#allocation2 + $0x40] sm:$0xff]
    %v52 = vld [vmem:[#allocation2 + $0x48] sm:$0xff]
    %v53 = vld [vmem:[#allocation2 + $0x50] sm:$0xff]
    %v54 = vld [vmem:[#allocation2 + $0x58] sm:$0xff]
    %v55 = vld [vmem:[#allocation2 + $0x60] sm:$0xff]
    %v56 = vld [vmem:[#allocation2 + $0x68] sm:$0xff]
    %v57 = vld [vmem:[#allocation2 + $0x70] sm:$0xff]
    %v58 = vld [vmem:[#allocation2 + $0x78] sm:$0xff]
    %v59 = vld [vmem:[#allocation3] sm:$0xff]
    %v60 = vld [vmem:[#allocation3 + $0x8] sm:$0xff]
    %v61 = vld [vmem:[#allocation3 + $0x10] sm:$0xff]
    %v62 = vld [vmem:[#allocation3 + $0x18] sm:$0xff]
    %v63 = vld [vmem:[#allocation3 + $0x20] sm:$0xff]
    %v64 = vld [vmem:[#allocation3 + $0x28] sm:$0xff]
    %v65 = vld [vmem:[#allocation3 + $0x30] sm:$0xff]
    %v66 = vld [vmem:[#allocation3 + $0x38] sm:$0xff]
    %v67 = vld [vmem:[#allocation3 + $0x40] sm:$0xff]
    %v68 = vld [vmem:[#allocation3 + $0x48] sm:$0xff]
    %v69 = vld [vmem:[#allocation3 + $0x50] sm:$0xff]
    %v70 = vld [vmem:[#allocation3 + $0x58] sm:$0xff]
    %v71 = vld [vmem:[#allocation3 + $0x60] sm:$0xff]
    %v72 = vld [vmem:[#allocation3 + $0x68] sm:$0xff]
    %v73 = vld [vmem:[#allocation3 + $0x70] sm:$0xff]
    %v74 = vld [vmem:[#allocation3 + $0x78] sm:$0xff]
    %75 = vadd.xlane.f32.xlu0 %v59
    %v76 = vpop.xlane.xlu0 %75
    %77 = vadd.xlane.f32.xlu0 %v60
    %v78 = vpop.xlane.xlu0 %77
    %79 = vadd.xlane.f32.xlu0 %v61
    %v80 = vpop.xlane.xlu0 %79
    %81 = vadd.xlane.f32.xlu0 %v62
    %v82 = vpop.xlane.xlu0 %81
    %83 = vadd.xlane.f32.xlu0 %v63
    %v84 = vpop.xlane.xlu0 %83
    %85 = vadd.xlane.f32.xlu0 %v64
    %v86 = vpop.xlane.xlu0 %85
    %87 = vadd.xlane.f32.xlu0 %v65
    %v88 = vpop.xlane.xlu0 %87
    %89 = vadd.xlane.f32.xlu0 %v66
    %v90 = vpop.xlane.xlu0 %89
    %91 = vadd.xlane.f32.xlu0 %v67
    %v92 = vpop.xlane.xlu0 %91
    %93 = vadd.xlane.f32.xlu0 %v68
    %v94 = vpop.xlane.xlu0 %93
    %95 = vadd.xlane.f32.xlu0 %v69
    %v96 = vpop.xlane.xlu0 %95
    %97 = vadd.xlane.f32.xlu0 %v70
    %v98 = vpop.xlane.xlu0 %97
    %99 = vadd.xlane.f32.xlu0 %v71
    %v100 = vpop.xlane.xlu0 %99
    %101 = vadd.xlane.f32.xlu0 %v72
    %v102 = vpop.xlane.xlu0 %101
    %103 = vadd.xlane.f32.xlu0 %v73
    %v104 = vpop.xlane.xlu0 %103
    %105 = vadd.xlane.f32.xlu0 %v74
    %v106 = vpop.xlane.xlu0 %105
    %v107 = vadd.f32 %v43, %v76
    %v108 = vadd.f32 %v44, %v78
    %v109 = vadd.f32 %v45, %v80
    %v110 = vadd.f32 %v46, %v82
    %v111 = vadd.f32 %v47, %v84
    %v112 = vadd.f32 %v48, %v86
    %v113 = vadd.f32 %v49, %v88
    %v114 = vadd.f32 %v50, %v90
    %v115 = vadd.f32 %v51, %v92
    %v116 = vadd.f32 %v52, %v94
    %v117 = vadd.f32 %v53, %v96
    %v118 = vadd.f32 %v54, %v98
    %v119 = vadd.f32 %v55, %v100
    %v120 = vadd.f32 %v56, %v102
    %v121 = vadd.f32 %v57, %v104
    %v122 = vadd.f32 %v58, %v106
    %vm123 = vcmask 7168
    %124 = vst.msk [vmem:[#allocation2] sm:$0xff] %vm123, %v107
    %125 = vst.msk [vmem:[#allocation2 + $0x8] sm:$0xff] %vm123, %v108
    %126 = vst.msk [vmem:[#allocation2 + $0x10] sm:$0xff] %vm123, %v109
    %127 = vst.msk [vmem:[#allocation2 + $0x18] sm:$0xff] %vm123, %v110
    %128 = vst.msk [vmem:[#allocation2 + $0x20] sm:$0xff] %vm123, %v111
    %129 = vst.msk [vmem:[#allocation2 + $0x28] sm:$0xff] %vm123, %v112
    %130 = vst.msk [vmem:[#allocation2 + $0x30] sm:$0xff] %vm123, %v113
    %131 = vst.msk [vmem:[#allocation2 + $0x38] sm:$0xff] %vm123, %v114
    %132 = vst.msk [vmem:[#allocation2 + $0x40] sm:$0xff] %vm123, %v115
    %133 = vst.msk [vmem:[#allocation2 + $0x48] sm:$0xff] %vm123, %v116
    %134 = vst.msk [vmem:[#allocation2 + $0x50] sm:$0xff] %vm123, %v117
    %135 = vst.msk [vmem:[#allocation2 + $0x58] sm:$0xff] %vm123, %v118
    %136 = vst.msk [vmem:[#allocation2 + $0x60] sm:$0xff] %vm123, %v119
    %137 = vst.msk [vmem:[#allocation2 + $0x68] sm:$0xff] %vm123, %v120
    %138 = vst.msk [vmem:[#allocation2 + $0x70] sm:$0xff] %vm123, %v121
    %139 = vst.msk [vmem:[#allocation2 + $0x78] sm:$0xff] %vm123, %v122
    // Predicated region
    $region14: #{tpu_custom_call.1} parent=1 // pred_check
      %p140 = pneg %p22
    $region15: #{tpu_custom_call.1} parent=1 // pred_check_branch
      %142 = sbr.rel (%p140) target = $region17
    $region16: #{tpu_custom_call.1} parent=1 // pred_region
      %v143 = vld [vmem:[#allocation2] sm:$0xff]
      %v144 = vld [vmem:[#allocation2 + $0x8] sm:$0xff]
      %v145 = vld [vmem:[#allocation2 + $0x10] sm:$0xff]
      %v146 = vld [vmem:[#allocation2 + $0x18] sm:$0xff]
      %v147 = vld [vmem:[#allocation2 + $0x20] sm:$0xff]
      %v148 = vld [vmem:[#allocation2 + $0x28] sm:$0xff]
      %v149 = vld [vmem:[#allocation2 + $0x30] sm:$0xff]
      %v150 = vld [vmem:[#allocation2 + $0x38] sm:$0xff]
      %v151 = vld [vmem:[#allocation2 + $0x40] sm:$0xff]
      %v152 = vld [vmem:[#allocation2 + $0x48] sm:$0xff]
      %v153 = vld [vmem:[#allocation2 + $0x50] sm:$0xff]
      %v154 = vld [vmem:[#allocation2 + $0x58] sm:$0xff]
      %v155 = vld [vmem:[#allocation2 + $0x60] sm:$0xff]
      %v156 = vld [vmem:[#allocation2 + $0x68] sm:$0xff]
      %v157 = vld [vmem:[#allocation2 + $0x70] sm:$0xff]
      %v158 = vld [vmem:[#allocation2 + $0x78] sm:$0xff]
      %159 = vst.msk [vmem:[%s1] sm:$0xff] %vm123, %v143
      %160 = vst.msk [vmem:[%s1 + $0x8] sm:$0xff] %vm123, %v144
      %161 = vst.msk [vmem:[%s1 + $0x10] sm:$0xff] %vm123, %v145
      %162 = vst.msk [vmem:[%s1 + $0x18] sm:$0xff] %vm123, %v146
      %163 = vst.msk [vmem:[%s1 + $0x20] sm:$0xff] %vm123, %v147
      %164 = vst.msk [vmem:[%s1 + $0x28] sm:$0xff] %vm123, %v148
      %165 = vst.msk [vmem:[%s1 + $0x30] sm:$0xff] %vm123, %v149
      %166 = vst.msk [vmem:[%s1 + $0x38] sm:$0xff] %vm123, %v150
      %167 = vst.msk [vmem:[%s1 + $0x40] sm:$0xff] %vm123, %v151
      %168 = vst.msk [vmem:[%s1 + $0x48] sm:$0xff] %vm123, %v152
      %169 = vst.msk [vmem:[%s1 + $0x50] sm:$0xff] %vm123, %v153
      %170 = vst.msk [vmem:[%s1 + $0x58] sm:$0xff] %vm123, %v154
      %171 = vst.msk [vmem:[%s1 + $0x60] sm:$0xff] %vm123, %v155
      %172 = vst.msk [vmem:[%s1 + $0x68] sm:$0xff] %vm123, %v156
      %173 = vst.msk [vmem:[%s1 + $0x70] sm:$0xff] %vm123, %v157
      %174 = vst.msk [vmem:[%s1 + $0x78] sm:$0xff] %vm123, %v158
    $region17: #{tpu_custom_call.1} parent=1 // pred_fallthru
      _
    // Predicated region
    $region18: #{tpu_custom_call.1} parent=1 // pred_check
      _
    $region19: #{tpu_custom_call.1} parent=1 // pred_check_branch
      %176 = sbr.rel (0) target = $region21
    $region20: #{tpu_custom_call.1} parent=1 // pred_region
      _
    $region21: #{tpu_custom_call.1} parent=1 // pred_fallthru
      _
    // Predicated region
    $region22: #{tpu_custom_call.1} parent=1 // pred_check
      _
    $region23: #{tpu_custom_call.1} parent=1 // pred_check_branch
      %178 = sbr.rel (0) target = $region25
    $region24: #{tpu_custom_call.1} parent=1 // pred_region
      _
    $region25: #{tpu_custom_call.1} parent=1 // pred_fallthru
      _
    %179 = vsyncpa [#allocation4], 1

</llo_original>
